<compile_context>
chip_gen: v7x
topology: tpu7x:2x2x1
jax: 0.10.0
libtpu: 0.0.40
codegen_flags: <defaults>
</compile_context>

<pallas_src>
import functools

import jax
import jax.numpy as jnp
from jax.experimental import pallas as pl
from jax.experimental.pallas import tpu as pltpu


def _round_up(x, m):
    return ((x + m - 1) // m) * m


# ----------------------------- Pallas kernels ------------------------------

def _matmul_bias_relu_kernel(a_ref, w_ref, b_ref, o_ref):
    # a: (TM, Kp) bf16 im2col patches, w: (Kp, TN) bf16 weights, b: (1, TN) f32.
    acc = jnp.dot(a_ref[...], w_ref[...], preferred_element_type=jnp.float32)
    acc = acc + b_ref[...]
    o_ref[...] = jnp.maximum(acc, 0.0).astype(o_ref.dtype)


def _maxpool_kernel(x_ref, o_ref, *, k, stride, oh, ow):
    # Reads the NHWC activation once; k*k shifted strided maxima, C on lanes.
    out = x_ref[:, pl.ds(0, oh, stride), pl.ds(0, ow, stride), :]
    for di in range(k):
        for dj in range(k):
            if di == 0 and dj == 0:
                continue
            out = jnp.maximum(
                out, x_ref[:, pl.ds(di, oh, stride), pl.ds(dj, ow, stride), :])
    o_ref[...] = out


def _dropout_kernel(x_ref, keep_ref, o_ref, *, inv_keep):
    o_ref[...] = x_ref[...] * keep_ref[...] * inv_keep


# ----------------------------- wrappers (glue) ------------------------------

def _im2col(x_nhwc, kh, kw, stride, pad):
    n, h, w, c = x_nhwc.shape
    xp = jnp.pad(x_nhwc, ((0, 0), (pad, pad), (pad, pad), (0, 0)))
    oh = (h + 2 * pad - kh) // stride + 1
    ow = (w + 2 * pad - kw) // stride + 1
    cols = []
    for i in range(kh):
        for j in range(kw):
            cols.append(xp[:, i:i + stride * oh:stride, j:j + stride * ow:stride, :])
    patches = jnp.stack(cols, axis=3)  # (N, OH, OW, KH*KW, C)
    return patches.reshape(n * oh * ow, kh * kw * c), oh, ow


def conv2d_relu(x_nhwc, layer):
    k, stride, pad, oc = layer["k"], layer["stride"], layer["pad"], layer["oc"]
    wmat, bias = layer["wmat"], layer["bias"]          # (Kp, Np) bf16, (1, Np) f32
    kp, np_ = wmat.shape

    n = x_nhwc.shape[0]
    patches, oh, ow = _im2col(x_nhwc, k, k, stride, pad)   # (M, K)
    m, kdim = patches.shape

    # Right-sized tiling: don't pad tiny layers up to 128 rows.
    tm = 128 if m >= 256 else _round_up(m, 16)             # 16 = bf16 sublane granule
    mp = _round_up(m, tm)
    tn = 128 if (np_ > 128 and np_ % 128 == 0) else np_

    a = jnp.pad(patches.astype(jnp.bfloat16), ((0, mp - m), (0, kp - kdim)))

    out = pl.pallas_call(
        _matmul_bias_relu_kernel,
        out_shape=jax.ShapeDtypeStruct((mp, np_), jnp.float32),
        grid=(mp // tm, np_ // tn),
        in_specs=[
            pl.BlockSpec((tm, kp), lambda i, j: (i, 0)),
            pl.BlockSpec((kp, tn), lambda i, j: (0, j)),
            pl.BlockSpec((1, tn), lambda i, j: (0, j)),
        ],
        out_specs=pl.BlockSpec((tm, tn), lambda i, j: (i, j)),
        compiler_params=pltpu.CompilerParams(
            dimension_semantics=("parallel", "parallel")),
    )(a, wmat, bias)
    return out[:m, :oc].reshape(n, oh, ow, oc)


def maxpool2d(x_nhwc, k, stride):
    n, h, w, c = x_nhwc.shape
    oh = (h - k) // stride + 1
    ow = (w - k) // stride + 1
    return pl.pallas_call(
        functools.partial(_maxpool_kernel, k=k, stride=stride, oh=oh, ow=ow),
        out_shape=jax.ShapeDtypeStruct((n, oh, ow, c), x_nhwc.dtype),
        in_specs=[pl.BlockSpec(memory_space=pltpu.MemorySpace.VMEM)],
        out_specs=pl.BlockSpec(memory_space=pltpu.MemorySpace.VMEM),
    )(x_nhwc)


def dropout(x, *, rate, training, key):
    if (not training) or rate == 0.0:
        return x  # nn.Dropout is identity in eval mode
    # Keep-mask drawn with jax.random (portable; pltpu.prng_* lacks a CPU/interpret
    # lowering).  Key is caller-supplied so the mask varies per training step.
    keep = jax.random.bernoulli(key, 1.0 - rate, x.shape).astype(x.dtype)
    return pl.pallas_call(
        functools.partial(_dropout_kernel, inv_keep=float(1.0 / (1.0 - rate))),
        out_shape=jax.ShapeDtypeStruct(x.shape, x.dtype),
        in_specs=[pl.BlockSpec(memory_space=pltpu.MemorySpace.VMEM),
                  pl.BlockSpec(memory_space=pltpu.MemorySpace.VMEM)],
        out_specs=pl.BlockSpec(memory_space=pltpu.MemorySpace.VMEM),
    )(x, keep)


# --------------------------- model definition -------------------------------

# AlexNet `.features` config: (out_c, in_c, kernel, stride, pad)
_ALEXNET_FEATURES_CFG = [
    (64, 3, 11, 4, 2),
    (192, 64, 5, 1, 2),
    (384, 192, 3, 1, 1),
    (256, 384, 3, 1, 1),
    (256, 256, 3, 1, 1),
]


def init_params(key):
    """Torch-layout conv params (random stand-in for pretrained weights)."""
    params = []
    for (oc, ic, k, s, p) in _ALEXNET_FEATURES_CFG:
        key, wk, bk = jax.random.split(key, 3)
        fan_in = ic * k * k
        w = jax.random.normal(wk, (oc, ic, k, k), jnp.float32) * (2.0 / fan_in) ** 0.5
        b = jax.random.normal(bk, (oc,), jnp.float32) * 0.01
        params.append({"w": w, "b": b, "oc": oc, "ic": ic, "k": k,
                       "stride": s, "pad": p})
    return params


def pack_params(params):
    """One-time weight prep (hoisted out of the forward): (OC,IC,KH,KW) ->
    (KH*KW*IC, OC), pad K/N to multiples of 128, cast to bf16; pad bias to N."""
    packed = []
    for layer in params:
        oc, ic, k = layer["oc"], layer["ic"], layer["k"]
        kdim = k * k * ic
        kp = _round_up(kdim, 128)
        np_ = _round_up(oc, 128)
        wmat = jnp.transpose(layer["w"], (2, 3, 1, 0)).reshape(kdim, oc)
        wmat = jnp.pad(wmat, ((0, kp - kdim), (0, np_ - oc))).astype(jnp.bfloat16)
        bias = jnp.pad(layer["b"], (0, np_ - oc)).reshape(1, np_).astype(jnp.float32)
        packed.append({"wmat": wmat, "bias": bias, "k": k,
                       "stride": layer["stride"], "pad": layer["pad"], "oc": oc})
    return packed


def feature_extractor_forward(x_nchw, packed_params, *, training=True,
                              dropout_rate=0.2, dropout_key=None):
    """FeatureExtractor.forward: cnn(x) -> view(N, -1) -> dropout(0.2)."""
    h = jnp.transpose(x_nchw, (0, 2, 3, 1)).astype(jnp.float32)  # NCHW -> NHWC
    # AlexNet features: conv1/relu, pool, conv2/relu, pool, conv3..5/relu, pool
    h = conv2d_relu(h, packed_params[0])
    h = maxpool2d(h, 3, 2)
    h = conv2d_relu(h, packed_params[1])
    h = maxpool2d(h, 3, 2)
    h = conv2d_relu(h, packed_params[2])
    h = conv2d_relu(h, packed_params[3])
    h = conv2d_relu(h, packed_params[4])
    h = maxpool2d(h, 3, 2)
    # features.view(N, -1): PyTorch flattens in (C, H, W) order.
    n = h.shape[0]
    feats = jnp.transpose(h, (0, 3, 1, 2)).reshape(n, -1)
    if dropout_key is None:
        dropout_key = jax.random.PRNGKey(0)
    feats = dropout(feats, rate=dropout_rate, training=training, key=dropout_key)
    return feats


if __name__ == "__main__":
    key = jax.random.PRNGKey(0)
    pkey, xkey, dkey = jax.random.split(key, 3)
    packed = pack_params(init_params(pkey))

    # image_C=3, image_H=image_W=64 (small shape consistent with the CNN backbone)
    x = jax.random.normal(xkey, (2, 3, 64, 64), jnp.float32)  # NCHW

    feats = feature_extractor_forward(x, packed, training=True, dropout_key=dkey)
    feats = jax.block_until_ready(feats)
    assert feats.shape == (2, 256), feats.shape
    assert feats.dtype == jnp.float32
    print("KERNEL_OK")
</pallas_src>

<mosaic_0001>
module attributes {stable_mosaic.version = 11 : i64} {
  func.func @_matmul_bias_relu_kernel(%arg0: i32, %arg1: i32, %arg2: memref<128x384xbf16, #tpu.memory_space<vmem>>, %arg3: memref<384x128xbf16, #tpu.memory_space<vmem>>, %arg4: memref<1x128xf32, #tpu.memory_space<vmem>>, %arg5: memref<128x128xf32, #tpu.memory_space<vmem>>) attributes {dimension_semantics = [#tpu.dimension_semantics<parallel>, #tpu.dimension_semantics<parallel>], iteration_bounds = array<i64: 4, 1>, scalar_prefetch = 0 : i64, scratch_operands = 0 : i64, tpu.core_type = #tpu.core_type<tc>, window_params = [{transform_indices = @transform_0, window_bounds = array<i64: 128, 384>}, {transform_indices = @transform_1, window_bounds = array<i64: 384, 128>}, {transform_indices = @transform_2, window_bounds = array<i64: 1, 128>}, {transform_indices = @transform_3, window_bounds = array<i64: 128, 128>}]} {
    %c0 = arith.constant 0 : index
    %c0_0 = arith.constant 0 : index
    %0 = vector.load %arg2[%c0, %c0_0] : memref<128x384xbf16, #tpu.memory_space<vmem>>, vector<128x384xbf16>
    %c0_1 = arith.constant 0 : index
    %c0_2 = arith.constant 0 : index
    %1 = vector.load %arg3[%c0_1, %c0_2] : memref<384x128xbf16, #tpu.memory_space<vmem>>, vector<384x128xbf16>
    %cst = arith.constant dense<0.000000e+00> : vector<128x128xf32>
    %2 = tpu.matmul %0, %1, %cst {dimension_numbers = #tpu.dot_dimension_numbers<[1], [0], [0], [1], [0, 0, 1, 1], [], []>} : vector<128x384xbf16>, vector<384x128xbf16>, vector<128x128xf32> -> vector<128x128xf32>
    %c0_3 = arith.constant 0 : index
    %c0_4 = arith.constant 0 : index
    %3 = vector.load %arg4[%c0_3, %c0_4] : memref<1x128xf32, #tpu.memory_space<vmem>>, vector<1x128xf32>
    %4 = vector.broadcast %3 : vector<1x128xf32> to vector<128x128xf32>
    %5 = arith.addf %2, %4 : vector<128x128xf32>
    %cst_5 = arith.constant 0.000000e+00 : f32
    %6 = vector.broadcast %cst_5 : f32 to vector<128x128xf32>
    %7 = arith.maximumf %5, %6 : vector<128x128xf32>
    %c0_6 = arith.constant 0 : index
    %c0_7 = arith.constant 0 : index
    %8 = vector.load %arg5[%c0_6, %c0_7] : memref<128x128xf32, #tpu.memory_space<vmem>>, vector<128x128xf32>
    tpu.vector_store %arg5[%c0_6, %c0_7], %7 {strides = array<i32>} : memref<128x128xf32, #tpu.memory_space<vmem>>, vector<128x128xf32>,
    return
  }
  func.func @transform_0(%arg0: i32, %arg1: i32) -> (i32, i32) {
    %c0_i32 = arith.constant 0 : i32
    %c0_i32_0 = arith.constant 0 : i32
    return %arg0, %c0_i32 : i32, i32
  }
  func.func @transform_1(%arg0: i32, %arg1: i32) -> (i32, i32) {
    %c0_i32 = arith.constant 0 : i32
    %c0_i32_0 = arith.constant 0 : i32
    return %c0_i32, %arg1 : i32, i32
  }
  func.func @transform_2(%arg0: i32, %arg1: i32) -> (i32, i32) {
    %c0_i32 = arith.constant 0 : i32
    %c0_i32_0 = arith.constant 0 : i32
    return %c0_i32, %arg1 : i32, i32
  }
  func.func @transform_3(%arg0: i32, %arg1: i32) -> (i32, i32) {
    %c0_i32 = arith.constant 0 : i32
    return %arg0, %arg1 : i32, i32
  }
}

</mosaic_0001>

<llo_original>
// kernel: tpu_custom_call.1
$region0: #{tpu_custom_call.1}
  #allocation0 [shape = 'u32[]', space=smem, size = 0x4, offset = 0x4, fixed_abs, tag = 'smem constant byte address 0x4 - core index']
  #allocation1 [shape = 'u32[144,128]{1,0:T(1,128)}', space=vmem, size = 0x12000, scoped, tag = 'internal scratch']
  %s0 = inlined_call_operand.hbm [shape: bf16[512,384], index: 0, kind: input, shape index: {}]
  %s1 = inlined_call_operand.hbm [shape: bf16[384,128], index: 1, kind: input, shape index: {}]
  %s2 = inlined_call_operand.vmem [shape: f32[1,128], index: 2, kind: input, shape index: {}]
  %s3 = inlined_call_operand.hbm [shape: f32[512,128], index: 3, kind: output, shape index: {}]
  %s4 = sld [smem:[#allocation0]]
  $region53: #{tpu_custom_call.1} parent=0
    _
  %s6 = ssub.s32 1, %s4
  %s7 = scalar_select 0, %s6, %s4
  $region1: #{tpu_custom_call.1} parent=0
    #allocation2 [shape = 'u8[196608]{0}', space=vmem, size = 0x30000, scoped, tag = 'input window, operand 0']
    #allocation3 [shape = 's32[2]{0}', space=sflag, size = 0x8, scoped, tag = 'scoped memory for tpu_custom_call.1']
    #allocation4 [shape = 's32[2]{0}', space=sflag, size = 0x8, scoped, tag = 'scoped memory for tpu_custom_call.1']
    #allocation5 [shape = 'u8[98304]{0}', space=vmem, size = 0x18000, scoped, tag = 'input window, operand 1, single buffered']
    #allocation6 [shape = 's32[1]{0}', space=sflag, size = 0x4, scoped, tag = 'scoped memory for tpu_custom_call.1']
    #allocation7 [shape = 'u8[131072]{0}', space=vmem, size = 0x20000, scoped, tag = 'output window, operand 0']
    %8 = vsyncpa [#allocation3], 0
    %s9 = scalar_lea.sflag [#allocation3], 1
    %10 = vsyncpa %s9, 0
    %11 = vsyncpa [#allocation6], 0
    %12 = vsyncpa [#allocation4], 0
    %s13 = scalar_lea.sflag [#allocation4], 1
    %14 = vsyncpa %s13, 0
    loop: start=0, step=1, limit=6
    $region2: #{tpu_custom_call.1} parent=1 // loop_pre_header
      _
    $region3: #{tpu_custom_call.1} parent=1 // loop_header
      %s16 = sphi 0, %s20
      %p17 = scmp.ge.s32.totalorder %s16, 6
      %s23 = sphi 0, %s35
      %s24 = sphi 0, %s31
      %s25 = sphi 0, %s23
      %s26 = sphi 0, %s24
      %s27 = sphi 0, %s25
      %s28 = sphi 0, %s26
      %s38 = sphi 0, %s40
      %s41 = sphi 0, %s38
      %s42 = sphi 0, %s41
      %s58 = sphi 0, %s42
      %s64 = sphi 0, %s66
      %s67 = sphi 0, %s64
      %s68 = sphi 0, %s67
      %s84 = sphi 0, %s68
      %s90 = sphi 0, %s92
      %s93 = sphi 0, %s90
      %s94 = sphi 0, %s93
      %s110 = sphi 0, %s94
      %s118 = sphi 0, %s120
      %s121 = sphi 0, %s118
      %s122 = sphi 0, %s121
      %s138 = sphi 0, %s122
    $region4: #{tpu_custom_call.1} parent=1 // loop_header_branch
      %19 = sbr.rel (%p17) target = $region8
    $region5: #{tpu_custom_call.1} parent=1 // loop_body
      %s21 = ssub.s32 %s16, 1
      %s22 = ssub.s32 %s16, 2
      %s29 = sadd.s32 1, %s24
      %p30 = scmp.ge.s32.totalorder %s29, 1
      %s31 = scalar_select %p30, 0, %s29
      %s32 = sadd.s32 1, %s23
      %s33 = scalar_select %p30, %s32, %s23
      %p34 = scmp.ge.s32.totalorder %s33, 4
      %s35 = scalar_select %p34, 0, %s33
      %s36 = ssub.s32 %s23, %s35
      %p37 = scmp.eq.s32.totalorder %s36, 0
      %s39 = sadd.s32 %s38, 1
      %s40 = scalar_select %p37, %s38, %s39
      %p43 = pneg %p37
      %p44 = scmp.eq.s32.totalorder %s16, 3
      %p45 = por %p43, %p44
      %p46 = scmp.ne.s32.totalorder %s38, %s41
      %p47 = scmp.eq.s32.totalorder %s16, 0
      %p48 = por %p46, %p47
      %p49 = scmp.ne.s32.totalorder %s38, %s41
      %p50 = scmp.eq.s32.totalorder %s21, 3
      %p51 = por %p49, %p50
      %p52 = scmp.ne.s32.totalorder %s41, %s42
      %p53 = scmp.eq.s32.totalorder %s21, 0
      %p54 = por %p52, %p53
      %p55 = scmp.ne.s32.totalorder %s41, %s42
      %p56 = scmp.eq.s32.totalorder %s22, 3
      %p57 = por %p55, %p56
      %p59 = scmp.ne.s32.totalorder %s42, %s58
      %p60 = scmp.eq.s32.totalorder %s22, 0
      %p61 = por %p59, %p60
      %s62 = ssub.s32 %s24, %s31
      %p63 = scmp.eq.s32.totalorder %s62, 0
      %s65 = sadd.s32 %s64, 1
      %s66 = scalar_select %p63, %s64, %s65
      %p69 = pneg %p63
      %p70 = scmp.eq.s32.totalorder %s16, 3
      %p71 = por %p69, %p70
      %p72 = scmp.ne.s32.totalorder %s64, %s67
      %p73 = scmp.eq.s32.totalorder %s16, 0
      %p74 = por %p72, %p73
      %p75 = scmp.ne.s32.totalorder %s64, %s67
      %p76 = scmp.eq.s32.totalorder %s21, 3
      %p77 = por %p75, %p76
      %p78 = scmp.ne.s32.totalorder %s67, %s68
      %p79 = scmp.eq.s32.totalorder %s21, 0
      %p80 = por %p78, %p79
      %p81 = scmp.ne.s32.totalorder %s67, %s68
      %p82 = scmp.eq.s32.totalorder %s22, 3
      %p83 = por %p81, %p82
      %p85 = scmp.ne.s32.totalorder %s68, %s84
      %p86 = scmp.eq.s32.totalorder %s22, 0
      %p87 = por %p85, %p86
      %s88 = ssub.s32 %s24, %s31
      %p89 = scmp.eq.s32.totalorder %s88, 0
      %s91 = sadd.s32 %s90, 1
      %s92 = scalar_select %p89, %s90, %s91
      %p95 = pneg %p89
      %p96 = scmp.eq.s32.totalorder %s16, 3
      %p97 = por %p95, %p96
      %p98 = scmp.ne.s32.totalorder %s90, %s93
      %p99 = scmp.eq.s32.totalorder %s16, 0
      %p100 = por %p98, %p99
      %p101 = scmp.ne.s32.totalorder %s90, %s93
      %p102 = scmp.eq.s32.totalorder %s21, 3
      %p103 = por %p101, %p102
      %p104 = scmp.ne.s32.totalorder %s93, %s94
      %p105 = scmp.eq.s32.totalorder %s21, 0
      %p106 = por %p104, %p105
      %p107 = scmp.ne.s32.totalorder %s93, %s94
      %p108 = scmp.eq.s32.totalorder %s22, 3
      %p109 = por %p107, %p108
      %p111 = scmp.ne.s32.totalorder %s94, %s110
      %p112 = scmp.eq.s32.totalorder %s22, 0
      %p113 = por %p111, %p112
      %s114 = ssub.s32 %s23, %s35
      %s115 = ssub.s32 %s24, %s31
      %s116 = sor.u32 %s114, %s115
      %p117 = scmp.eq.s32.totalorder %s116, 0
      %s119 = sadd.s32 %s118, 1
      %s120 = scalar_select %p117, %s118, %s119
      %p123 = pneg %p117
      %p124 = scmp.eq.s32.totalorder %s16, 3
      %p125 = por %p123, %p124
      %p126 = scmp.ne.s32.totalorder %s118, %s121
      %p127 = scmp.eq.s32.totalorder %s16, 0
      %p128 = por %p126, %p127
      %p129 = scmp.ne.s32.totalorder %s118, %s121
      %p130 = scmp.eq.s32.totalorder %s21, 3
      %p131 = por %p129, %p130
      %p132 = scmp.ne.s32.totalorder %s121, %s122
      %p133 = scmp.eq.s32.totalorder %s21, 0
      %p134 = por %p132, %p133
      %p135 = scmp.ne.s32.totalorder %s121, %s122
      %p136 = scmp.eq.s32.totalorder %s22, 3
      %p137 = por %p135, %p136
      %p139 = scmp.ne.s32.totalorder %s122, %s138
      %p140 = scmp.eq.s32.totalorder %s22, 0
      %p141 = por %p139, %p140
      %p142 = scmp.le.s32.totalorder 1, %s16
      %p143 = scmp.lt.s32.totalorder %s16, 5
      %p144 = pnand %p142, %p143
      %p145 = pneg %p144
      // Predicated region
      $region9: #{tpu_custom_call.1} parent=5 // pred_check
        _
      $region10: #{tpu_custom_call.1} parent=5 // pred_check_branch
        %147 = sbr.rel (%p144) target = $region12
      $region11: #{tpu_custom_call.1} parent=5 // pred_region
        %s148 = ssub.s32 %s16, 1
        // Predicated region
        $region13: #{tpu_custom_call.1} parent=11 // pred_check
          %p149 = pneg %p80
        $region14: #{tpu_custom_call.1} parent=11 // pred_check_branch
          %151 = sbr.rel (%p149) target = $region16
        $region15: #{tpu_custom_call.1} parent=11 // pred_region
          %s153 = ssub.s32 3072, 3072
          %154 = vsyncadd [#allocation6], %s153
          %s155 = smul.addr %s26, 64
          %s156 = scalar_lea.hbm %s1, %s155
          %s157 = sshll.u32 [#allocation5], 4
          %s158 = int_to_ptr.vmem [resolvable:$true] %s157
          %163 = dma.hbm_to_vmem [thread:$0]  %s156, 3072, %s158, [#allocation6], 64, 64, 4
        $region16: #{tpu_custom_call.1} parent=11 // pred_fallthru
          _
        // Predicated region
        $region17: #{tpu_custom_call.1} parent=11 // pred_check
          %p164 = pneg %p106
        $region18: #{tpu_custom_call.1} parent=11 // pred_check_branch
          %166 = sbr.rel (%p164) target = $region20
        $region19: #{tpu_custom_call.1} parent=11 // pred_region
          %p167 = scmp.lt.s32.totalorder %s26, 0
          %s168 = scalar_select %p167, %s26, 0
          %s169 = scalar_lea.vmem %s2, %s168
        $region20: #{tpu_custom_call.1} parent=11 // pred_fallthru
          _
      $region12: #{tpu_custom_call.1} parent=5 // pred_fallthru
        _
      %p170 = scmp.lt.s32.totalorder %s16, 4
      // Predicated region
      $region21: #{tpu_custom_call.1} parent=5 // pred_check
        %p171 = pneg %p170
      $region22: #{tpu_custom_call.1} parent=5 // pred_check_branch
        %173 = sbr.rel (%p171) target = $region24
      $region23: #{tpu_custom_call.1} parent=5 // pred_region
        // Predicated region
        $region25: #{tpu_custom_call.1} parent=23 // pred_check
          %p174 = pneg %p48
        $region26: #{tpu_custom_call.1} parent=23 // pred_check_branch
          %176 = sbr.rel (%p174) target = $region28
        $region27: #{tpu_custom_call.1} parent=23 // pred_region
          %s177 = sand.u32 %s38, 1
          %s178 = scalar_lea.sflag [#allocation3], %s177
          %s179 = sand.u32 %s38, 1
          %s180 = smul.addr %s179, 192
          %s181 = scalar_lea.vmem [#allocation2], %s180
          %s182 = smul.u32 16, %s23
          %s184 = ssub.s32 3072, 3072
          %185 = vsyncadd %s178, %s184
          %s186 = smul.addr %s182, 3
          %s187 = smul.addr %s186, 64
          %s188 = scalar_lea.hbm %s0, %s187
          %s189 = sshll.u32 %s181, 4
          %s190 = int_to_ptr.vmem [resolvable:$true] %s189
          %195 = dma.hbm_to_vmem [thread:$0]  %s188, 3072, %s190, %s178, 192, 192, 12
        $region28: #{tpu_custom_call.1} parent=23 // pred_fallthru
          _
      $region24: #{tpu_custom_call.1} parent=5 // pred_fallthru
        _
      %p196 = scmp.le.s32.totalorder 1, %s16
      %p197 = scmp.lt.s32.totalorder %s16, 5
      %p198 = pnand %p196, %p197
      %p199 = pneg %p198
      // Predicated region
      $region29: #{tpu_custom_call.1} parent=5 // pred_check
        _
      $region30: #{tpu_custom_call.1} parent=5 // pred_check_branch
        %201 = sbr.rel (%p198) target = $region32
      $region31: #{tpu_custom_call.1} parent=5 // pred_region
        %s202 = ssub.s32 %s16, 1
        %s203 = sand.u32 %s41, 1
        %s204 = scalar_lea.sflag [#allocation3], %s203
        %s205 = sand.u32 %s41, 1
        %s206 = smul.addr %s205, 192
        %s207 = scalar_lea.vmem [#allocation2], %s206
        // Predicated region
        $region33: #{tpu_custom_call.1} parent=31 // pred_check
          %p208 = pneg %p54
        $region34: #{tpu_custom_call.1} parent=31 // pred_check_branch
          %210 = sbr.rel (%p208) target = $region36
        $region35: #{tpu_custom_call.1} parent=31 // pred_region
          %211 = dma.done %s204, 3072
        $region36: #{tpu_custom_call.1} parent=31 // pred_fallthru
          _
        // Predicated region
        $region37: #{tpu_custom_call.1} parent=31 // pred_check
          %p212 = pneg %p80
        $region38: #{tpu_custom_call.1} parent=31 // pred_check_branch
          %214 = sbr.rel (%p212) target = $region40
        $region39: #{tpu_custom_call.1} parent=31 // pred_region
          %215 = dma.done [#allocation6], 3072
        $region40: #{tpu_custom_call.1} parent=31 // pred_fallthru
          _
        %s216 = sand.u32 %s41, 1
        %s217 = scalar_lea.sflag [#allocation3], %s216
        %s218 = sand.u32 %s41, 1
        %s219 = smul.addr %s218, 192
        %s220 = scalar_lea.vmem [#allocation2], %s219
        %p221 = pneg %p54
        %p222 = pneg %p51
        %p223 = pneg %p80
        %p224 = pneg %p77
        %p225 = scmp.lt.s32.totalorder %s26, 0
        %s226 = scalar_select %p225, %s26, 0
        %s227 = scalar_lea.vmem %s2, %s226
        %p228 = pneg %p106
        %p229 = pneg %p103
        %p230 = pneg %p134
        %p231 = pneg %p131
        %s232 = sand.u32 %s121, 1
        %s233 = scalar_lea.sflag [#allocation4], %s232
        %s234 = sand.u32 %s121, 1
        %s235 = smul.addr %s234, 128
        %s236 = scalar_lea.vmem [#allocation7], %s235
        %s237 = smul.u32 16, %s25
        %p238 = scmp.lt.s32.totalorder %s26, 0
        %s239 = scalar_select %p238, %s26, 0
        %s240 = scalar_lea.vmem %s2, %s239
        %s241 = smul.u32 16, %s25
        %v243 = vld [vmem:[%s207] sm:$0xff]
        %v244 = vld [vmem:[%s207 + $0x8] sm:$0xf]
        %v245 = vld [vmem:[%s207 + $0xc] sm:$0xff]
        %v246 = vld [vmem:[%s207 + $0x14] sm:$0xf]
        %v247 = vld [vmem:[%s207 + $0x18] sm:$0xff]
        %v248 = vld [vmem:[%s207 + $0x20] sm:$0xf]
        %v249 = vld [vmem:[%s207 + $0x24] sm:$0xff]
        %v250 = vld [vmem:[%s207 + $0x2c] sm:$0xf]
        %v251 = vld [vmem:[%s207 + $0x30] sm:$0xff]
        %v252 = vld [vmem:[%s207 + $0x38] sm:$0xf]
        %v253 = vld [vmem:[%s207 + $0x3c] sm:$0xff]
        %v254 = vld [vmem:[%s207 + $0x44] sm:$0xf]
        %v255 = vld [vmem:[%s207 + $0x48] sm:$0xff]
        %v256 = vld [vmem:[%s207 + $0x50] sm:$0xf]
        %v257 = vld [vmem:[%s207 + $0x54] sm:$0xff]
        %v258 = vld [vmem:[%s207 + $0x5c] sm:$0xf]
        %v259 = vld [vmem:[%s207 + $0x60] sm:$0xff]
        %v260 = vld [vmem:[%s207 + $0x68] sm:$0xf]
        %v261 = vld [vmem:[%s207 + $0x6c] sm:$0xff]
        %v262 = vld [vmem:[%s207 + $0x74] sm:$0xf]
        %v263 = vld [vmem:[%s207 + $0x78] sm:$0xff]
        %v264 = vld [vmem:[%s207 + $0x80] sm:$0xf]
        %v265 = vld [vmem:[%s207 + $0x84] sm:$0xff]
        %v266 = vld [vmem:[%s207 + $0x8c] sm:$0xf]
        %v267 = vld [vmem:[%s207 + $0x90] sm:$0xff]
        %v268 = vld [vmem:[%s207 + $0x98] sm:$0xf]
        %v269 = vld [vmem:[%s207 + $0x9c] sm:$0xff]
        %v270 = vld [vmem:[%s207 + $0xa4] sm:$0xf]
        %v271 = vld [vmem:[%s207 + $0xa8] sm:$0xff]
        %v272 = vld [vmem:[%s207 + $0xb0] sm:$0xf]
        %v273 = vld [vmem:[%s207 + $0xb4] sm:$0xff]
        %v274 = vld [vmem:[%s207 + $0xbc] sm:$0xf]
        %v275 = vld [vmem:[#allocation5] sm:$0xf]
        %v276 = vld [vmem:[#allocation5 + $0x4] sm:$0xf]
        %v277 = vld [vmem:[#allocation5 + $0x8] sm:$0xf]
        %v278 = vld [vmem:[#allocation5 + $0xc] sm:$0xf]
        %v279 = vld [vmem:[#allocation5 + $0x10] sm:$0xf]
        %v280 = vld [vmem:[#allocation5 + $0x14] sm:$0xf]
        %v281 = vld [vmem:[#allocation5 + $0x18] sm:$0xf]
        %v282 = vld [vmem:[#allocation5 + $0x1c] sm:$0xf]
        %v283 = vld [vmem:[#allocation5 + $0x20] sm:$0xf]
        %v284 = vld [vmem:[#allocation5 + $0x24] sm:$0xf]
        %v285 = vld [vmem:[#allocation5 + $0x28] sm:$0xf]
        %v286 = vld [vmem:[#allocation5 + $0x2c] sm:$0xf]
        %v287 = vld [vmem:[#allocation5 + $0x30] sm:$0xf]
        %v288 = vld [vmem:[#allocation5 + $0x34] sm:$0xf]
        %v289 = vld [vmem:[#allocation5 + $0x38] sm:$0xf]
        %v290 = vld [vmem:[#allocation5 + $0x3c] sm:$0xf]
        %v291 = vld [vmem:[#allocation5 + $0x40] sm:$0xf]
        %v292 = vld [vmem:[#allocation5 + $0x44] sm:$0xf]
        %v293 = vld [vmem:[#allocation5 + $0x48] sm:$0xf]
        %v294 = vld [vmem:[#allocation5 + $0x4c] sm:$0xf]
        %v295 = vld [vmem:[#allocation5 + $0x50] sm:$0xf]
        %v296 = vld [vmem:[#allocation5 + $0x54] sm:$0xf]
        %v297 = vld [vmem:[#allocation5 + $0x58] sm:$0xf]
        %v298 = vld [vmem:[#allocation5 + $0x5c] sm:$0xf]
        %v299 = vld [vmem:[#allocation5 + $0x60] sm:$0xf]
        %v300 = vld [vmem:[#allocation5 + $0x64] sm:$0xf]
        %v301 = vld [vmem:[#allocation5 + $0x68] sm:$0xf]
        %v302 = vld [vmem:[#allocation5 + $0x6c] sm:$0xf]
        %v303 = vld [vmem:[#allocation5 + $0x70] sm:$0xf]
        %v304 = vld [vmem:[#allocation5 + $0x74] sm:$0xf]
        %v305 = vld [vmem:[#allocation5 + $0x78] sm:$0xf]
        %v306 = vld [vmem:[#allocation5 + $0x7c] sm:$0xf]
        %v307 = vld [vmem:[#allocation5 + $0x80] sm:$0xf]
        %v308 = vld [vmem:[#allocation5 + $0x84] sm:$0xf]
        %v309 = vld [vmem:[#allocation5 + $0x88] sm:$0xf]
        %v310 = vld [vmem:[#allocation5 + $0x8c] sm:$0xf]
        %v311 = vld [vmem:[#allocation5 + $0x90] sm:$0xf]
        %v312 = vld [vmem:[#allocation5 + $0x94] sm:$0xf]
        %v313 = vld [vmem:[#allocation5 + $0x98] sm:$0xf]
        %v314 = vld [vmem:[#allocation5 + $0x9c] sm:$0xf]
        %v315 = vld [vmem:[#allocation5 + $0xa0] sm:$0xf]
        %v316 = vld [vmem:[#allocation5 + $0xa4] sm:$0xf]
        %v317 = vld [vmem:[#allocation5 + $0xa8] sm:$0xf]
        %v318 = vld [vmem:[#allocation5 + $0xac] sm:$0xf]
        %v319 = vld [vmem:[#allocation5 + $0xb0] sm:$0xf]
        %v320 = vld [vmem:[#allocation5 + $0xb4] sm:$0xf]
        %v321 = vld [vmem:[#allocation5 + $0xb8] sm:$0xf]
        %v322 = vld [vmem:[#allocation5 + $0xbc] sm:$0xf]
        %v323 = vld [vmem:[%s240] sm:$0x1]
        %v325 = vlaneseq
        %v326 = vshrl.u32 %v325, 7
        %v327 = vsub.s32 0, %v326
        %v328 = vrot.slane %v323, %v327
        %v362 = vunpack.c.l.b16 %v243
        %v363 = vunpack.c.h.b16 %v243
        %v364 = vunpack.c.l.b16 %v244
        %v365 = vunpack.c.l.b16 %v245
        %v366 = vunpack.c.h.b16 %v245
        %v367 = vunpack.c.l.b16 %v246
        %v368 = vunpack.c.l.b16 %v247
        %v369 = vunpack.c.h.b16 %v247
        %v370 = vunpack.c.l.b16 %v248
        %v371 = vunpack.c.l.b16 %v249
        %v372 = vunpack.c.h.b16 %v249
        %v373 = vunpack.c.l.b16 %v250
        %v374 = vunpack.c.l.b16 %v251
        %v375 = vunpack.c.h.b16 %v251
        %v376 = vunpack.c.l.b16 %v252
        %v377 = vunpack.c.l.b16 %v253
        %v378 = vunpack.c.h.b16 %v253
        %v379 = vunpack.c.l.b16 %v254
        %v380 = vunpack.c.l.b16 %v255
        %v381 = vunpack.c.h.b16 %v255
        %v382 = vunpack.c.l.b16 %v256
        %v383 = vunpack.c.l.b16 %v257
        %v384 = vunpack.c.h.b16 %v257
        %v385 = vunpack.c.l.b16 %v258
        %v386 = vunpack.c.l.b16 %v259
        %v387 = vunpack.c.h.b16 %v259
        %v388 = vunpack.c.l.b16 %v260
        %v389 = vunpack.c.l.b16 %v261
        %v390 = vunpack.c.h.b16 %v261
        %v391 = vunpack.c.l.b16 %v262
        %v392 = vunpack.c.l.b16 %v263
        %v393 = vunpack.c.h.b16 %v263
        %v394 = vunpack.c.l.b16 %v264
        %v395 = vunpack.c.l.b16 %v265
        %v396 = vunpack.c.h.b16 %v265
        %v397 = vunpack.c.l.b16 %v266
        %v398 = vunpack.c.l.b16 %v267
        %v399 = vunpack.c.h.b16 %v267
        %v400 = vunpack.c.l.b16 %v268
        %v401 = vunpack.c.l.b16 %v269
        %v402 = vunpack.c.h.b16 %v269
        %v403 = vunpack.c.l.b16 %v270
        %v404 = vunpack.c.l.b16 %v271
        %v405 = vunpack.c.h.b16 %v271
        %v406 = vunpack.c.l.b16 %v272
        %v407 = vunpack.c.l.b16 %v273
        %v408 = vunpack.c.h.b16 %v273
        %v409 = vunpack.c.l.b16 %v274
        %v410 = vpack.c.b16 %v365, %v362
        %v411 = vpack.c.b16 %v366, %v363
        %v412 = vpack.c.b16 %v367, %v364
        %v413 = vpack.c.b16 %v371, %v368
        %v414 = vpack.c.b16 %v372, %v369
        %v415 = vpack.c.b16 %v373, %v370
        %v416 = vpack.c.b16 %v377, %v374
        %v417 = vpack.c.b16 %v378, %v375
        %v418 = vpack.c.b16 %v379, %v376
        %v419 = vpack.c.b16 %v383, %v380
        %v420 = vpack.c.b16 %v384, %v381
        %v421 = vpack.c.b16 %v385, %v382
        %v422 = vpack.c.b16 %v389, %v386
        %v423 = vpack.c.b16 %v390, %v387
        %v424 = vpack.c.b16 %v391, %v388
        %v425 = vpack.c.b16 %v395, %v392
        %v426 = vpack.c.b16 %v396, %v393
        %v427 = vpack.c.b16 %v397, %v394
        %v428 = vpack.c.b16 %v401, %v398
        %v429 = vpack.c.b16 %v402, %v399
        %v430 = vpack.c.b16 %v403, %v400
        %v431 = vpack.c.b16 %v407, %v404
        %v432 = vpack.c.b16 %v408, %v405
        %v433 = vpack.c.b16 %v409, %v406
        %v506 = vunpack.c.l.b16 %v275
        %v507 = vunpack.c.l.b16 %v276
        %v508 = vunpack.c.l.b16 %v277
        %v509 = vunpack.c.l.b16 %v278
        %v510 = vunpack.c.l.b16 %v279
        %v511 = vunpack.c.l.b16 %v280
        %v512 = vunpack.c.l.b16 %v281
        %v513 = vunpack.c.l.b16 %v282
        %v514 = vunpack.c.l.b16 %v283
        %v515 = vunpack.c.l.b16 %v284
        %v516 = vunpack.c.l.b16 %v285
        %v517 = vunpack.c.l.b16 %v286
        %v518 = vunpack.c.l.b16 %v287
        %v519 = vunpack.c.l.b16 %v288
        %v520 = vunpack.c.l.b16 %v289
        %v521 = vunpack.c.l.b16 %v290
        %v522 = vunpack.c.l.b16 %v291
        %v523 = vunpack.c.l.b16 %v292
        %v524 = vunpack.c.l.b16 %v293
        %v525 = vunpack.c.l.b16 %v294
        %v526 = vunpack.c.l.b16 %v295
        %v527 = vunpack.c.l.b16 %v296
        %v528 = vunpack.c.l.b16 %v297
        %v529 = vunpack.c.l.b16 %v298
        %v530 = vunpack.c.l.b16 %v299
        %v531 = vunpack.c.l.b16 %v300
        %v532 = vunpack.c.l.b16 %v301
        %v533 = vunpack.c.l.b16 %v302
        %v534 = vunpack.c.l.b16 %v303
        %v535 = vunpack.c.l.b16 %v304
        %v536 = vunpack.c.l.b16 %v305
        %v537 = vunpack.c.l.b16 %v306
        %v538 = vunpack.c.l.b16 %v307
        %v539 = vunpack.c.l.b16 %v308
        %v540 = vunpack.c.l.b16 %v309
        %v541 = vunpack.c.l.b16 %v310
        %v542 = vunpack.c.l.b16 %v311
        %v543 = vunpack.c.l.b16 %v312
        %v544 = vunpack.c.l.b16 %v313
        %v545 = vunpack.c.l.b16 %v314
        %v546 = vunpack.c.l.b16 %v315
        %v547 = vunpack.c.l.b16 %v316
        %v548 = vunpack.c.l.b16 %v317
        %v549 = vunpack.c.l.b16 %v318
        %v550 = vunpack.c.l.b16 %v319
        %v551 = vunpack.c.l.b16 %v320
        %v552 = vunpack.c.l.b16 %v321
        %v553 = vunpack.c.l.b16 %v322
        %v554 = vpack.c.b16 %v507, %v506
        %v555 = vpack.c.b16 %v509, %v508
        %v556 = vpack.c.b16 %v511, %v510
        %v557 = vpack.c.b16 %v513, %v512
        %v558 = vpack.c.b16 %v515, %v514
        %v559 = vpack.c.b16 %v517, %v516
        %v560 = vpack.c.b16 %v519, %v518
        %v561 = vpack.c.b16 %v521, %v520
        %v562 = vpack.c.b16 %v523, %v522
        %v563 = vpack.c.b16 %v525, %v524
        %v564 = vpack.c.b16 %v527, %v526
        %v565 = vpack.c.b16 %v529, %v528
        %v566 = vpack.c.b16 %v531, %v530
        %v567 = vpack.c.b16 %v533, %v532
        %v568 = vpack.c.b16 %v535, %v534
        %v569 = vpack.c.b16 %v537, %v536
        %v570 = vpack.c.b16 %v539, %v538
        %v571 = vpack.c.b16 %v541, %v540
        %v572 = vpack.c.b16 %v543, %v542
        %v573 = vpack.c.b16 %v545, %v544
        %v574 = vpack.c.b16 %v547, %v546
        %v575 = vpack.c.b16 %v549, %v548
        %v576 = vpack.c.b16 %v551, %v550
        %v577 = vpack.c.b16 %v553, %v552
        %602 = vmatprep.subr.bf16.mxu0 0
        %603 = vmatpush1.bf16.msra.mxu0 %v554
        %604 = vmatprep.subr.bf16.mxu0 0
        %605 = vmatpush1.bf16.msra.mxu0 %v555
        %606 = vmatprep.subr.bf16.mxu0 0
        %607 = vmatpush1.bf16.msra.mxu0 %v556
        %608 = vmatprep.subr.bf16.mxu0 0
        %609 = vmatpush1.bf16.msra.mxu0 %v557
        %610 = vmatprep.subr.bf16.mxu0 0
        %611 = vmatpush1.bf16.msra.mxu0 %v558
        %612 = vmatprep.subr.bf16.mxu0 0
        %613 = vmatpush1.bf16.msra.mxu0 %v559
        %614 = vmatprep.subr.bf16.mxu0 0
        %615 = vmatpush1.bf16.msra.mxu0 %v560
        %616 = vmatprep.subr.bf16.mxu0 0
        %617 = vmatpush1.bf16.msra.mxu0 %v561
        %618 = vmatprep.subr.bf16.mxu0 0
        %619 = vmatpush1.bf16.msra.mxu0 %v562
        %620 = vmatprep.subr.bf16.mxu0 0
        %621 = vmatpush1.bf16.msra.mxu0 %v563
        %622 = vmatprep.subr.bf16.mxu0 0
        %623 = vmatpush1.bf16.msra.mxu0 %v564
        %624 = vmatprep.subr.bf16.mxu0 0
        %625 = vmatpush1.bf16.msra.mxu0 %v565
        %626 = vmatprep.subr.bf16.mxu0 0
        %627 = vmatpush1.bf16.msra.mxu0 %v566
        %628 = vmatprep.subr.bf16.mxu0 0
        %629 = vmatpush1.bf16.msra.mxu0 %v567
        %630 = vmatprep.subr.bf16.mxu0 0
        %631 = vmatpush1.bf16.msra.mxu0 %v568
        %632 = vmatprep.subr.bf16.mxu0 0
        %633 = vmatpush1.bf16.msra.mxu0 %v569
        %634 = vmatprep.mubr.bf16.mxu0 %v411
        %635 = vmatmul.mubr.bf16.gmra.mrb[0].mxu0 %v410
        %v636 = vpop.f32.mrb[0].mxu0
        %v637 = vadd.f32 %v328, %v636
        %v638 = vpop.f32.mrb[0].mxu0
        %v639 = vpop.f32.mrb[0].mxu0
        %v640 = vadd.f32 %v328, %v639
        %v641 = vpop.f32.mrb[0].mxu0
        %642 = vmatprep.mubr.bf16.mxu0 %v414
        %643 = vmatmul.mubr.bf16.gmra.mrb[0].mxu0 %v413
        %v644 = vpop.f32.mrb[0].mxu0
        %v645 = vadd.f32 %v328, %v644
        %v646 = vpop.f32.mrb[0].mxu0
        %v647 = vpop.f32.mrb[0].mxu0
        %v648 = vadd.f32 %v328, %v647
        %v649 = vpop.f32.mrb[0].mxu0
        %650 = vmatprep.mubr.bf16.mxu0 %v417
        %651 = vmatmul.mubr.bf16.gmra.mrb[0].mxu0 %v416
        %v652 = vpop.f32.mrb[0].mxu0
        %v653 = vadd.f32 %v328, %v652
        %v654 = vpop.f32.mrb[0].mxu0
        %v655 = vpop.f32.mrb[0].mxu0
        %v656 = vadd.f32 %v328, %v655
        %v657 = vpop.f32.mrb[0].mxu0
        %658 = vmatprep.mubr.bf16.mxu0 %v420
        %659 = vmatmul.mubr.bf16.gmra.mrb[0].mxu0 %v419
        %v660 = vpop.f32.mrb[0].mxu0
        %v661 = vadd.f32 %v328, %v660
        %v662 = vpop.f32.mrb[0].mxu0
        %v663 = vpop.f32.mrb[0].mxu0
        %v664 = vadd.f32 %v328, %v663
        %v665 = vpop.f32.mrb[0].mxu0
        %666 = vmatprep.mubr.bf16.mxu0 %v423
        %667 = vmatmul.mubr.bf16.gmra.mrb[0].mxu0 %v422
        %v668 = vpop.f32.mrb[0].mxu0
        %v669 = vadd.f32 %v328, %v668
        %v670 = vpop.f32.mrb[0].mxu0
        %v671 = vpop.f32.mrb[0].mxu0
        %v672 = vadd.f32 %v328, %v671
        %v673 = vpop.f32.mrb[0].mxu0
        %674 = vmatprep.mubr.bf16.mxu0 %v426
        %675 = vmatmul.mubr.bf16.gmra.mrb[0].mxu0 %v425
        %v676 = vpop.f32.mrb[0].mxu0
        %v677 = vadd.f32 %v328, %v676
        %v678 = vpop.f32.mrb[0].mxu0
        %v679 = vpop.f32.mrb[0].mxu0
        %v680 = vadd.f32 %v328, %v679
        %v681 = vpop.f32.mrb[0].mxu0
        %682 = vmatprep.mubr.bf16.mxu0 %v429
        %683 = vmatmul.mubr.bf16.gmra.mrb[0].mxu0 %v428
        %v684 = vpop.f32.mrb[0].mxu0
        %v685 = vadd.f32 %v328, %v684
        %v686 = vpop.f32.mrb[0].mxu0
        %v687 = vpop.f32.mrb[0].mxu0
        %v688 = vadd.f32 %v328, %v687
        %v689 = vpop.f32.mrb[0].mxu0
        %690 = vmatprep.mubr.bf16.mxu0 %v432
        %691 = vmatmul.mubr.bf16.gmra.mrb[0].mxu0 %v431
        %v692 = vpop.f32.mrb[0].mxu0
        %v693 = vadd.f32 %v328, %v692
        %v694 = vpop.f32.mrb[0].mxu0
        %v695 = vpop.f32.mrb[0].mxu0
        %v696 = vadd.f32 %v328, %v695
        %v697 = vpop.f32.mrb[0].mxu0
        %698 = vdwg.mxu0
        %699 = vmatprep.subr.bf16.mxu0 0
        %700 = vmatpush1.bf16.msra.mxu0 %v570
        %701 = vmatprep.subr.bf16.mxu0 0
        %702 = vmatpush1.bf16.msra.mxu0 %v571
        %703 = vmatprep.subr.bf16.mxu0 0
        %704 = vmatpush1.bf16.msra.mxu0 %v572
        %705 = vmatprep.subr.bf16.mxu0 0
        %706 = vmatpush1.bf16.msra.mxu0 %v573
        %707 = vmatprep.subr.bf16.mxu0 0
        %708 = vmatpush1.bf16.msra.mxu0 %v574
        %709 = vmatprep.subr.bf16.mxu0 0
        %710 = vmatpush1.bf16.msra.mxu0 %v575
        %711 = vmatprep.subr.bf16.mxu0 0
        %712 = vmatpush1.bf16.msra.mxu0 %v576
        %713 = vmatprep.subr.bf16.mxu0 0
        %714 = vmatpush1.bf16.msra.mxu0 %v577
        %715 = vmatprep.subr.bf16.mxu0 0
        %716 = vmatpush1.bf16.msra.mxu0 0
        %717 = vmatprep.subr.bf16.mxu0 0
        %718 = vmatpush1.bf16.msra.mxu0 0
        %719 = vmatprep.subr.bf16.mxu0 0
        %720 = vmatpush1.bf16.msra.mxu0 0
        %721 = vmatprep.subr.bf16.mxu0 0
        %722 = vmatpush1.bf16.msra.mxu0 0
        %723 = vmatprep.subr.bf16.mxu0 0
        %724 = vmatpush1.bf16.msra.mxu0 0
        %725 = vmatprep.subr.bf16.mxu0 0
        %726 = vmatpush1.bf16.msra.mxu0 0
        %727 = vmatprep.subr.bf16.mxu0 0
        %728 = vmatpush1.bf16.msra.mxu0 0
        %729 = vmatprep.subr.bf16.mxu0 0
        %730 = vmatpush1.bf16.msra.mxu0 0
        %731 = vmatprep.mubr.bf16.mxu0 0
        %732 = vmatmul.mubr.bf16.gmra.mrb[0].mxu0 %v412
        %v733 = vpop.f32.mrb[0].mxu0
        %v734 = vadd.f32 %v637, %v733
        %v735 = vpop.f32.mrb[0].mxu0
        %v736 = vpop.f32.mrb[0].mxu0
        %v737 = vadd.f32 %v640, %v736
        %v738 = vpop.f32.mrb[0].mxu0
        %739 = vmatprep.mubr.bf16.mxu0 0
        %740 = vmatmul.mubr.bf16.gmra.mrb[0].mxu0 %v415
        %v741 = vpop.f32.mrb[0].mxu0
        %v742 = vadd.f32 %v645, %v741
        %v743 = vpop.f32.mrb[0].mxu0
        %v744 = vpop.f32.mrb[0].mxu0
        %v745 = vadd.f32 %v648, %v744
        %v746 = vpop.f32.mrb[0].mxu0
        %747 = vmatprep.mubr.bf16.mxu0 0
        %748 = vmatmul.mubr.bf16.gmra.mrb[0].mxu0 %v418
        %v749 = vpop.f32.mrb[0].mxu0
        %v750 = vadd.f32 %v653, %v749
        %v751 = vpop.f32.mrb[0].mxu0
        %v752 = vpop.f32.mrb[0].mxu0
        %v753 = vadd.f32 %v656, %v752
        %v754 = vpop.f32.mrb[0].mxu0
        %755 = vmatprep.mubr.bf16.mxu0 0
        %756 = vmatmul.mubr.bf16.gmra.mrb[0].mxu0 %v421
        %v757 = vpop.f32.mrb[0].mxu0
        %v758 = vadd.f32 %v661, %v757
        %v759 = vpop.f32.mrb[0].mxu0
        %v760 = vpop.f32.mrb[0].mxu0
        %v761 = vadd.f32 %v664, %v760
        %v762 = vpop.f32.mrb[0].mxu0
        %763 = vmatprep.mubr.bf16.mxu0 0
        %764 = vmatmul.mubr.bf16.gmra.mrb[0].mxu0 %v424
        %v765 = vpop.f32.mrb[0].mxu0
        %v766 = vadd.f32 %v669, %v765
        %v767 = vpop.f32.mrb[0].mxu0
        %v768 = vpop.f32.mrb[0].mxu0
        %v769 = vadd.f32 %v672, %v768
        %v770 = vpop.f32.mrb[0].mxu0
        %771 = vmatprep.mubr.bf16.mxu0 0
        %772 = vmatmul.mubr.bf16.gmra.mrb[0].mxu0 %v427
        %v773 = vpop.f32.mrb[0].mxu0
        %v774 = vadd.f32 %v677, %v773
        %v775 = vpop.f32.mrb[0].mxu0
        %v776 = vpop.f32.mrb[0].mxu0
        %v777 = vadd.f32 %v680, %v776
        %v778 = vpop.f32.mrb[0].mxu0
        %779 = vmatprep.mubr.bf16.mxu0 0
        %780 = vmatmul.mubr.bf16.gmra.mrb[0].mxu0 %v430
        %v781 = vpop.f32.mrb[0].mxu0
        %v782 = vadd.f32 %v685, %v781
        %v783 = vpop.f32.mrb[0].mxu0
        %v784 = vpop.f32.mrb[0].mxu0
        %v785 = vadd.f32 %v688, %v784
        %v786 = vpop.f32.mrb[0].mxu0
        %787 = vmatprep.mubr.bf16.mxu0 0
        %788 = vmatmul.mubr.bf16.gmra.mrb[0].mxu0 %v433
        %v789 = vpop.f32.mrb[0].mxu0
        %v790 = vadd.f32 %v693, %v789
        %v791 = vpop.f32.mrb[0].mxu0
        %v792 = vpop.f32.mrb[0].mxu0
        %v793 = vadd.f32 %v696, %v792
        %v794 = vpop.f32.mrb[0].mxu0
        %795 = vdwg.mxu0
        %v796 = vmax.f32 %v734, 0.0
        %v797 = vmax.f32 %v737, 0.0
        %v798 = vmax.f32 %v742, 0.0
        %v799 = vmax.f32 %v745, 0.0
        %v800 = vmax.f32 %v750, 0.0
        %v801 = vmax.f32 %v753, 0.0
        %v802 = vmax.f32 %v758, 0.0
        %v803 = vmax.f32 %v761, 0.0
        %v804 = vmax.f32 %v766, 0.0
        %v805 = vmax.f32 %v769, 0.0
        %v806 = vmax.f32 %v774, 0.0
        %v807 = vmax.f32 %v777, 0.0
        %v808 = vmax.f32 %v782, 0.0
        %v809 = vmax.f32 %v785, 0.0
        %v810 = vmax.f32 %v790, 0.0
        %v811 = vmax.f32 %v793, 0.0
        %812 = vst [vmem:[%s236] sm:$0xff] %v796
        %813 = vst [vmem:[%s236 + $0x8] sm:$0xff] %v797
        %814 = vst [vmem:[%s236 + $0x10] sm:$0xff] %v798
        %815 = vst [vmem:[%s236 + $0x18] sm:$0xff] %v799
        %816 = vst [vmem:[%s236 + $0x20] sm:$0xff] %v800
        %817 = vst [vmem:[%s236 + $0x28] sm:$0xff] %v801
        %818 = vst [vmem:[%s236 + $0x30] sm:$0xff] %v802
        %819 = vst [vmem:[%s236 + $0x38] sm:$0xff] %v803
        %820 = vst [vmem:[%s236 + $0x40] sm:$0xff] %v804
        %821 = vst [vmem:[%s236 + $0x48] sm:$0xff] %v805
        %822 = vst [vmem:[%s236 + $0x50] sm:$0xff] %v806
        %823 = vst [vmem:[%s236 + $0x58] sm:$0xff] %v807
        %824 = vst [vmem:[%s236 + $0x60] sm:$0xff] %v808
        %825 = vst [vmem:[%s236 + $0x68] sm:$0xff] %v809
        %826 = vst [vmem:[%s236 + $0x70] sm:$0xff] %v810
        %827 = vst [vmem:[%s236 + $0x78] sm:$0xff] %v811
        %s828 = sand.u32 %s121, 1
        %s829 = scalar_lea.sflag [#allocation4], %s828
        %s830 = sand.u32 %s121, 1
        %s831 = smul.addr %s830, 128
        %s832 = scalar_lea.vmem [#allocation7], %s831
        // Predicated region
        $region41: #{tpu_custom_call.1} parent=31 // pred_check
          %p833 = pneg %p131
        $region42: #{tpu_custom_call.1} parent=31 // pred_check_branch
          %835 = sbr.rel (%p833) target = $region44
        $region43: #{tpu_custom_call.1} parent=31 // pred_region
          %s836 = smul.u32 16, %s25
          %s838 = ssub.s32 2048, 2048
          %839 = vsyncadd %s829, %s838
          %s840 = sadd.s32 %s26, %s836
          %s841 = smul.addr %s840, 128
          %s842 = scalar_lea.hbm %s3, %s841
          %s843 = sshll.u32 %s832, 4
          %s844 = int_to_ptr.vmem [resolvable:$true] %s843
          %849 = dma.vmem_to_hbm [thread:$0]  %s844, 2048, %s842, %s829, 128, 128, 8
        $region44: #{tpu_custom_call.1} parent=31 // pred_fallthru
          _
      $region32: #{tpu_custom_call.1} parent=5 // pred_fallthru
        _
      %p850 = scmp.le.s32.totalorder 2, %s16
      // Predicated region
      $region45: #{tpu_custom_call.1} parent=5 // pred_check
        %p851 = pneg %p850
      $region46: #{tpu_custom_call.1} parent=5 // pred_check_branch
        %853 = sbr.rel (%p851) target = $region48
      $region47: #{tpu_custom_call.1} parent=5 // pred_region
        %s854 = ssub.s32 %s16, 2
        // Predicated region
        $region49: #{tpu_custom_call.1} parent=47 // pred_check
          %p855 = pneg %p137
        $region50: #{tpu_custom_call.1} parent=47 // pred_check_branch
          %857 = sbr.rel (%p855) target = $region52
        $region51: #{tpu_custom_call.1} parent=47 // pred_region
          %s858 = sand.u32 %s122, 1
          %s859 = scalar_lea.sflag [#allocation4], %s858
          %s860 = sand.u32 %s122, 1
          %s861 = smul.addr %s860, 128
          %s862 = scalar_lea.vmem [#allocation7], %s861
          %863 = dma.done %s859, 2048
        $region52: #{tpu_custom_call.1} parent=47 // pred_fallthru
          _
      $region48: #{tpu_custom_call.1} parent=5 // pred_fallthru
        _
    $region6: #{tpu_custom_call.1} parent=1 // loop_footer
      %s20 = sadd.s32 1, %s16
    $region7: #{tpu_custom_call.1} parent=1 // loop_footer_branch
      %15 = sbr.rel target = $region3
    $region8: #{tpu_custom_call.1} parent=1 // loop_exit
      _
    %864 = vsyncpa [#allocation3], 1
    %s865 = scalar_lea.sflag [#allocation3], 1
    %866 = vsyncpa %s865, 1
    %867 = vsyncpa [#allocation6], 1
    %868 = vsyncpa [#allocation4], 1
    %s869 = scalar_lea.sflag [#allocation4], 1
    %870 = vsyncpa %s869, 1

</llo_original>
